<compile_context>
chip_gen: v5e
topology: v5e:2x2
jax: 0.10.0
libtpu: 0.0.40
codegen_flags: <defaults>
</compile_context>

<pallas_src>
import numpy as np
import jax
import jax.numpy as jnp
from jax.experimental import pallas as pl
from jax.experimental.pallas import tpu as pltpu

# ----------------------------- problem sizes --------------------------------
B = 8            # batch size
H = 64           # num_hidden (latent width)
A = 4            # num_action
NBLOCKS = 2      # num_hidden_layers (residual blocks)
R = 16           # rbins (reward distribution support size)
RMIN, RMAX = -1.0, 1.0
BN_EPS = 1e-5
NLIN = 2 + 2 * NBLOCKS   # body linears: enc1(state part), enc2, 2 per block
NW = NLIN + 1            # + fused [state_pred | dist] head
LANES = 128              # every in-kernel tile is (*, 128)

# v_blob row layout
IDX_ACT = NW             # rows NW..NW+A-1 : action one-hot rows of enc1
IDX_BINS = NW + A        # last row        : reward support bins
NVROWS = NW + A + 1


# ============================ Pallas kernel ==================================
def dynamics_kernel(state_ref, act_ref, w_ref, v_ref, out_ref):
    x = state_ref[...]                     # (B, 128) f32, lanes H:128 are zero
    act = act_ref[...]                     # (B, 1)   int32

    def linear(v, i):
        # bf16 MXU operands, f32 accumulate; bias is pre-broadcast (B, 128).
        return (jnp.dot(v.astype(jnp.bfloat16), w_ref[i],
                        preferred_element_type=jnp.float32)
                + v_ref[i])

    # --- encoding stem: Linear([state | onehot(a)]) (+ folded BN) + ReLU -----
    # one-hot @ W_action replaced by a VPU select chain over A pre-broadcast
    # rows; the a==0 row seeds the chain (no zero-tile init).
    a_contrib = v_ref[IDX_ACT]
    for a in range(1, A):
        a_contrib = jnp.where(act == a, v_ref[IDX_ACT + a], a_contrib)

    h = jnp.maximum(linear(x, 0) + a_contrib, 0.0)
    x = linear(h, 1)                       # encoding output linear (no BN/act)

    # --- residual blocks (statically unrolled) --------------------------------
    for blk in range(NBLOCKS):
        y = jnp.maximum(linear(x, 2 + 2 * blk), 0.0)
        y = linear(y, 3 + 2 * blk)
        x = jnp.maximum(x + y, 0.0)

    # --- fused head: (B,128) = [next_state_raw(0:64) | reward_logits(64:80) | 0]
    heads = linear(x, NLIN)

    lane = jax.lax.broadcasted_iota(jnp.int32, (B, LANES), 1)
    is_ns = lane < H
    is_r = jnp.logical_and(lane >= H, lane < H + R)

    # reward distribution: masked softmax over the 16 logit lanes
    r_shift = jnp.where(is_r, heads, -jnp.inf)
    r_max = jnp.max(r_shift, axis=1, keepdims=True)
    e = jnp.exp(r_shift - r_max)           # exactly 0 outside the logit lanes
    probs = e * pl.reciprocal(jnp.sum(e, axis=1, keepdims=True), approx=True)
    reward = jnp.sum(probs * v_ref[IDX_BINS], axis=1, keepdims=True)

    # normalize_scale over the 64 next-state lanes (matches torch: no eps)
    ns_max = jnp.max(jnp.where(is_ns, heads, -jnp.inf), axis=1, keepdims=True)
    ns_min = jnp.min(jnp.where(is_ns, heads, jnp.inf), axis=1, keepdims=True)
    ns_norm = (heads - ns_min) * pl.reciprocal(ns_max - ns_min, approx=True)

    # single lane-dense fused store: [ns | probs | reward | 0]
    out = jnp.where(is_ns, ns_norm, probs)
    out_ref[...] = jnp.where(lane == H + R, reward, out)


# ============================ host-side wrappers =============================
def pack_params(p):
    """Fold eval-mode BN into the preceding Linear and pack two DMA blobs."""
    def fold(w, b, bn):
        g, be, m, v = bn
        scale = g * jax.lax.rsqrt(v + BN_EPS)
        return w * scale[None, :], (b - m) * scale + be

    enc1_wf, enc1_bf = fold(p["enc1_w"], p["enc1_b"], p["enc1_bn"])
    ws = [enc1_wf[:H], p["enc2_w"]]            # state part of enc1, enc2
    bs = [enc1_bf, p["enc2_b"]]
    for i in range(NBLOCKS):
        w1f, b1f = fold(p[f"blk{i}_fc1_w"], p[f"blk{i}_fc1_b"], p[f"blk{i}_bn1"])
        w2f, b2f = fold(p[f"blk{i}_fc2_w"], p[f"blk{i}_fc2_b"], p[f"blk{i}_bn2"])
        ws += [w1f, w2f]
        bs += [b1f, b2f]

    # fused head, column layout [state_pred(0:64) | dist(64:80) | pad]
    ws.append(jnp.concatenate([p["sp_w"], p["dist_w"]], axis=1))    # (H, H+R)
    bs.append(jnp.concatenate([p["sp_b"], p["dist_b"]]))            # (H+R,)

    def pad_w(w):
        out = jnp.zeros((LANES, LANES), jnp.float32)
        return out.at[:w.shape[0], :w.shape[1]].set(w)

    w_blob = jnp.stack([pad_w(w) for w in ws]).astype(jnp.bfloat16)  # (NW,128,128)

    def pad_row(v):
        row = jnp.zeros((LANES,), jnp.float32).at[:v.shape[0]].set(v)
        return jnp.broadcast_to(row, (B, LANES))

    rows = [pad_row(b) for b in bs]                                  # NW biases
    rows += [pad_row(enc1_wf[H + a]) for a in range(A)]              # A action rows
    bins_row = jnp.zeros((LANES,), jnp.float32).at[H:H + R].set(p["bins"])
    rows.append(jnp.broadcast_to(bins_row, (B, LANES)))              # bins
    v_blob = jnp.stack(rows)                                         # (NVROWS,B,128)

    return w_blob, v_blob


@jax.jit
def dynamics_forward(packed, state, action):
    w_blob, v_blob = packed
    state_pad = jnp.pad(state, ((0, 0), (0, LANES - H)))             # lane-dense input
    act = action.reshape(B, 1).astype(jnp.int32)
    vmem = pl.BlockSpec(memory_space=pltpu.MemorySpace.VMEM)
    fused = pl.pallas_call(
        dynamics_kernel,
        out_shape=jax.ShapeDtypeStruct((B, LANES), jnp.float32),
        in_specs=[vmem, vmem, vmem, vmem],
        out_specs=vmem,
        cost_estimate=pl.CostEstimate(
            flops=2 * B * LANES * LANES * NW,
            transcendentals=B * LANES + 2 * B,
            bytes_accessed=(NW * LANES * LANES * 2          # bf16 weights
                            + NVROWS * B * LANES * 4        # f32 bias/act/bins blob
                            + 2 * B * LANES * 4 + B * 4)),  # state in / fused out / act
    )(state_pad, act, w_blob, v_blob)
    next_state = fused[:, :H]
    rprobs = fused[:, H:H + R]
    reward = fused[:, H + R]
    return next_state, rprobs, reward


# ============================ pure-JAX reference =============================
def _bn_eval(x, bn):
    g, be, m, v = bn
    return (x - m) * (g / jnp.sqrt(v + BN_EPS)) + be


def reference_forward(p, state, action):
    onehot = jax.nn.one_hot(action, A, dtype=jnp.float32)
    z = jnp.concatenate([state, onehot], axis=1)
    h = jnp.maximum(_bn_eval(z @ p["enc1_w"] + p["enc1_b"], p["enc1_bn"]), 0.0)
    x = h @ p["enc2_w"] + p["enc2_b"]
    for i in range(NBLOCKS):
        y = jnp.maximum(_bn_eval(x @ p[f"blk{i}_fc1_w"] + p[f"blk{i}_fc1_b"],
                                 p[f"blk{i}_bn1"]), 0.0)
        y = _bn_eval(y @ p[f"blk{i}_fc2_w"] + p[f"blk{i}_fc2_b"], p[f"blk{i}_bn2"])
        x = jnp.maximum(x + y, 0.0)
    probs = jax.nn.softmax(x @ p["dist_w"] + p["dist_b"], axis=1)
    reward = jnp.sum(probs * p["bins"][None, :], axis=1)
    ns = x @ p["sp_w"] + p["sp_b"]
    mx = jnp.max(ns, axis=1, keepdims=True)
    mn = jnp.min(ns, axis=1, keepdims=True)
    return (ns - mn) / (mx - mn), probs, reward


# ============================ parameter init =================================
def init_params(key):
    keys = iter(jax.random.split(key, 64))

    def dense(fan_in, fan_out):
        w = jax.random.normal(next(keys), (fan_in, fan_out), jnp.float32) / np.sqrt(fan_in)
        b = 0.05 * jax.random.normal(next(keys), (fan_out,), jnp.float32)
        return w, b

    def bn(n):
        gamma = 1.0 + 0.1 * jax.random.normal(next(keys), (n,), jnp.float32)
        beta = 0.1 * jax.random.normal(next(keys), (n,), jnp.float32)
        mean = 0.1 * jax.random.normal(next(keys), (n,), jnp.float32)
        var = 0.5 + jax.random.uniform(next(keys), (n,), jnp.float32)
        return gamma, beta, mean, var

    p = {}
    p["enc1_w"], p["enc1_b"] = dense(H + A, H)     # encoding stem Linear
    p["enc1_bn"] = bn(H)
    p["enc2_w"], p["enc2_b"] = dense(H, H)         # encoding output Linear
    for i in range(NBLOCKS):                       # residual blocks
        p[f"blk{i}_fc1_w"], p[f"blk{i}_fc1_b"] = dense(H, H)
        p[f"blk{i}_bn1"] = bn(H)
        p[f"blk{i}_fc2_w"], p[f"blk{i}_fc2_b"] = dense(H, H)
        p[f"blk{i}_bn2"] = bn(H)
    p["dist_w"], p["dist_b"] = dense(H, R)         # Distributional fc
    p["sp_w"], p["sp_b"] = dense(H, H)             # state_predictor
    p["bins"] = jnp.linspace(RMIN, RMAX, R, dtype=jnp.float32)
    return p


# ================================== main =====================================
if __name__ == "__main__":
    key = jax.random.PRNGKey(0)
    k_state, k_act, k_par = jax.random.split(key, 3)

    state = jax.random.normal(k_state, (B, H), jnp.float32)
    action = jax.random.randint(k_act, (B,), 0, A, dtype=jnp.int32)

    params = init_params(k_par)
    packed = pack_params(params)

    next_state, reward_probs, reward = jax.block_until_ready(
        dynamics_forward(packed, state, action))

    ns_ref, probs_ref, reward_ref = jax.block_until_ready(
        reference_forward(params, state, action))

    # Tolerances account for bf16 matmul operands (f32 accumulate) in the kernel
    # vs. the all-f32 reference.
    ok = (np.allclose(np.asarray(next_state), np.asarray(ns_ref), rtol=3e-2, atol=2e-2)
          and np.allclose(np.asarray(reward_probs), np.asarray(probs_ref), rtol=3e-2, atol=2e-2)
          and np.allclose(np.asarray(reward), np.asarray(reward_ref), rtol=3e-2, atol=2e-2))
    if not ok:
        raise AssertionError(
            f"mismatch:\n pallas ns={next_state}\n ref ns={ns_ref}\n"
            f" pallas r={reward}\n ref r={reward_ref}")
    print("KERNEL_OK")
</pallas_src>

<mosaic_0001>
module attributes {stable_mosaic.version = 11 : i64} {
  func.func @dynamics_kernel(%arg0: memref<8x128xf32, #tpu.memory_space<vmem>>, %arg1: memref<8x1xi32, #tpu.memory_space<vmem>>, %arg2: memref<7x128x128xbf16, #tpu.memory_space<vmem>>, %arg3: memref<12x8x128xf32, #tpu.memory_space<vmem>>, %arg4: memref<8x128xf32, #tpu.memory_space<vmem>>) attributes {dimension_semantics = [], scalar_prefetch = 0 : i64, scratch_operands = 0 : i64, tpu.core_type = #tpu.core_type<tc>} {
    %c0 = arith.constant 0 : index
    %c0_0 = arith.constant 0 : index
    %0 = vector.load %arg0[%c0, %c0_0] : memref<8x128xf32, #tpu.memory_space<vmem>>, vector<8x128xf32>
    %c0_1 = arith.constant 0 : index
    %c0_2 = arith.constant 0 : index
    %1 = vector.load %arg1[%c0_1, %c0_2] : memref<8x1xi32, #tpu.memory_space<vmem>>, vector<8x1xi32>
    %c7 = arith.constant 7 : index
    %c0_3 = arith.constant 0 : index
    %c0_4 = arith.constant 0 : index
    %2 = vector.load %arg3[%c7, %c0_3, %c0_4] : memref<12x8x128xf32, #tpu.memory_space<vmem>>, vector<1x8x128xf32>
    %3 = vector.shape_cast %2 : vector<1x8x128xf32> to vector<8x128xf32>
    %c1_i32 = arith.constant 1 : i32
    %4 = vector.broadcast %c1_i32 : i32 to vector<8x1xi32>
    %5 = arith.cmpi eq, %1, %4 : vector<8x1xi32>
    %c8 = arith.constant 8 : index
    %c0_5 = arith.constant 0 : index
    %c0_6 = arith.constant 0 : index
    %6 = vector.load %arg3[%c8, %c0_5, %c0_6] : memref<12x8x128xf32, #tpu.memory_space<vmem>>, vector<1x8x128xf32>
    %7 = vector.shape_cast %6 : vector<1x8x128xf32> to vector<8x128xf32>
    %8 = vector.shape_cast %5 : vector<8x1xi1> to vector<8x1xi1>
    %9 = vector.broadcast %8 : vector<8x1xi1> to vector<8x128xi1>
    %10 = arith.select %9, %7, %3 : vector<8x128xi1>, vector<8x128xf32>
    %c2_i32 = arith.constant 2 : i32
    %11 = vector.broadcast %c2_i32 : i32 to vector<8x1xi32>
    %12 = arith.cmpi eq, %1, %11 : vector<8x1xi32>
    %c9 = arith.constant 9 : index
    %c0_7 = arith.constant 0 : index
    %c0_8 = arith.constant 0 : index
    %13 = vector.load %arg3[%c9, %c0_7, %c0_8] : memref<12x8x128xf32, #tpu.memory_space<vmem>>, vector<1x8x128xf32>
    %14 = vector.shape_cast %13 : vector<1x8x128xf32> to vector<8x128xf32>
    %15 = vector.shape_cast %12 : vector<8x1xi1> to vector<8x1xi1>
    %16 = vector.broadcast %15 : vector<8x1xi1> to vector<8x128xi1>
    %17 = arith.select %16, %14, %10 : vector<8x128xi1>, vector<8x128xf32>
    %c3_i32 = arith.constant 3 : i32
    %18 = vector.broadcast %c3_i32 : i32 to vector<8x1xi32>
    %19 = arith.cmpi eq, %1, %18 : vector<8x1xi32>
    %c10 = arith.constant 10 : index
    %c0_9 = arith.constant 0 : index
    %c0_10 = arith.constant 0 : index
    %20 = vector.load %arg3[%c10, %c0_9, %c0_10] : memref<12x8x128xf32, #tpu.memory_space<vmem>>, vector<1x8x128xf32>
    %21 = vector.shape_cast %20 : vector<1x8x128xf32> to vector<8x128xf32>
    %22 = vector.shape_cast %19 : vector<8x1xi1> to vector<8x1xi1>
    %23 = vector.broadcast %22 : vector<8x1xi1> to vector<8x128xi1>
    %24 = arith.select %23, %21, %17 : vector<8x128xi1>, vector<8x128xf32>
    %25 = arith.truncf %0 : vector<8x128xf32> to vector<8x128xbf16>
    %c0_11 = arith.constant 0 : index
    %c0_12 = arith.constant 0 : index
    %c0_13 = arith.constant 0 : index
    %26 = vector.load %arg2[%c0_11, %c0_12, %c0_13] : memref<7x128x128xbf16, #tpu.memory_space<vmem>>, vector<1x128x128xbf16>
    %27 = vector.shape_cast %26 : vector<1x128x128xbf16> to vector<128x128xbf16>
    %cst = arith.constant dense<0.000000e+00> : vector<8x128xf32>
    %28 = tpu.matmul %25, %27, %cst {dimension_numbers = #tpu.dot_dimension_numbers<[1], [0], [0], [1], [0, 0, 1, 1], [], []>} : vector<8x128xbf16>, vector<128x128xbf16>, vector<8x128xf32> -> vector<8x128xf32>
    %c0_14 = arith.constant 0 : index
    %c0_15 = arith.constant 0 : index
    %c0_16 = arith.constant 0 : index
    %29 = vector.load %arg3[%c0_14, %c0_15, %c0_16] : memref<12x8x128xf32, #tpu.memory_space<vmem>>, vector<1x8x128xf32>
    %30 = vector.shape_cast %29 : vector<1x8x128xf32> to vector<8x128xf32>
    %31 = arith.addf %28, %30 : vector<8x128xf32>
    %32 = arith.addf %31, %24 : vector<8x128xf32>
    %cst_17 = arith.constant 0.000000e+00 : f32
    %33 = vector.broadcast %cst_17 : f32 to vector<8x128xf32>
    %34 = arith.maximumf %32, %33 : vector<8x128xf32>
    %35 = arith.truncf %34 : vector<8x128xf32> to vector<8x128xbf16>
    %c1 = arith.constant 1 : index
    %c0_18 = arith.constant 0 : index
    %c0_19 = arith.constant 0 : index
    %36 = vector.load %arg2[%c1, %c0_18, %c0_19] : memref<7x128x128xbf16, #tpu.memory_space<vmem>>, vector<1x128x128xbf16>
    %37 = vector.shape_cast %36 : vector<1x128x128xbf16> to vector<128x128xbf16>
    %cst_20 = arith.constant dense<0.000000e+00> : vector<8x128xf32>
    %38 = tpu.matmul %35, %37, %cst_20 {dimension_numbers = #tpu.dot_dimension_numbers<[1], [0], [0], [1], [0, 0, 1, 1], [], []>} : vector<8x128xbf16>, vector<128x128xbf16>, vector<8x128xf32> -> vector<8x128xf32>
    %c1_21 = arith.constant 1 : index
    %c0_22 = arith.constant 0 : index
    %c0_23 = arith.constant 0 : index
    %39 = vector.load %arg3[%c1_21, %c0_22, %c0_23] : memref<12x8x128xf32, #tpu.memory_space<vmem>>, vector<1x8x128xf32>
    %40 = vector.shape_cast %39 : vector<1x8x128xf32> to vector<8x128xf32>
    %41 = arith.addf %38, %40 : vector<8x128xf32>
    %42 = arith.truncf %41 : vector<8x128xf32> to vector<8x128xbf16>
    %c2 = arith.constant 2 : index
    %c0_24 = arith.constant 0 : index
    %c0_25 = arith.constant 0 : index
    %43 = vector.load %arg2[%c2, %c0_24, %c0_25] : memref<7x128x128xbf16, #tpu.memory_space<vmem>>, vector<1x128x128xbf16>
    %44 = vector.shape_cast %43 : vector<1x128x128xbf16> to vector<128x128xbf16>
    %cst_26 = arith.constant dense<0.000000e+00> : vector<8x128xf32>
    %45 = tpu.matmul %42, %44, %cst_26 {dimension_numbers = #tpu.dot_dimension_numbers<[1], [0], [0], [1], [0, 0, 1, 1], [], []>} : vector<8x128xbf16>, vector<128x128xbf16>, vector<8x128xf32> -> vector<8x128xf32>
    %c2_27 = arith.constant 2 : index
    %c0_28 = arith.constant 0 : index
    %c0_29 = arith.constant 0 : index
    %46 = vector.load %arg3[%c2_27, %c0_28, %c0_29] : memref<12x8x128xf32, #tpu.memory_space<vmem>>, vector<1x8x128xf32>
    %47 = vector.shape_cast %46 : vector<1x8x128xf32> to vector<8x128xf32>
    %48 = arith.addf %45, %47 : vector<8x128xf32>
    %cst_30 = arith.constant 0.000000e+00 : f32
    %49 = vector.broadcast %cst_30 : f32 to vector<8x128xf32>
    %50 = arith.maximumf %48, %49 : vector<8x128xf32>
    %51 = arith.truncf %50 : vector<8x128xf32> to vector<8x128xbf16>
    %c3 = arith.constant 3 : index
    %c0_31 = arith.constant 0 : index
    %c0_32 = arith.constant 0 : index
    %52 = vector.load %arg2[%c3, %c0_31, %c0_32] : memref<7x128x128xbf16, #tpu.memory_space<vmem>>, vector<1x128x128xbf16>
    %53 = vector.shape_cast %52 : vector<1x128x128xbf16> to vector<128x128xbf16>
    %cst_33 = arith.constant dense<0.000000e+00> : vector<8x128xf32>
    %54 = tpu.matmul %51, %53, %cst_33 {dimension_numbers = #tpu.dot_dimension_numbers<[1], [0], [0], [1], [0, 0, 1, 1], [], []>} : vector<8x128xbf16>, vector<128x128xbf16>, vector<8x128xf32> -> vector<8x128xf32>
    %c3_34 = arith.constant 3 : index
    %c0_35 = arith.constant 0 : index
    %c0_36 = arith.constant 0 : index
    %55 = vector.load %arg3[%c3_34, %c0_35, %c0_36] : memref<12x8x128xf32, #tpu.memory_space<vmem>>, vector<1x8x128xf32>
    %56 = vector.shape_cast %55 : vector<1x8x128xf32> to vector<8x128xf32>
    %57 = arith.addf %54, %56 : vector<8x128xf32>
    %58 = arith.addf %41, %57 : vector<8x128xf32>
    %cst_37 = arith.constant 0.000000e+00 : f32
    %59 = vector.broadcast %cst_37 : f32 to vector<8x128xf32>
    %60 = arith.maximumf %58, %59 : vector<8x128xf32>
    %61 = arith.truncf %60 : vector<8x128xf32> to vector<8x128xbf16>
    %c4 = arith.constant 4 : index
    %c0_38 = arith.constant 0 : index
    %c0_39 = arith.constant 0 : index
    %62 = vector.load %arg2[%c4, %c0_38, %c0_39] : memref<7x128x128xbf16, #tpu.memory_space<vmem>>, vector<1x128x128xbf16>
    %63 = vector.shape_cast %62 : vector<1x128x128xbf16> to vector<128x128xbf16>
    %cst_40 = arith.constant dense<0.000000e+00> : vector<8x128xf32>
    %64 = tpu.matmul %61, %63, %cst_40 {dimension_numbers = #tpu.dot_dimension_numbers<[1], [0], [0], [1], [0, 0, 1, 1], [], []>} : vector<8x128xbf16>, vector<128x128xbf16>, vector<8x128xf32> -> vector<8x128xf32>
    %c4_41 = arith.constant 4 : index
    %c0_42 = arith.constant 0 : index
    %c0_43 = arith.constant 0 : index
    %65 = vector.load %arg3[%c4_41, %c0_42, %c0_43] : memref<12x8x128xf32, #tpu.memory_space<vmem>>, vector<1x8x128xf32>
    %66 = vector.shape_cast %65 : vector<1x8x128xf32> to vector<8x128xf32>
    %67 = arith.addf %64, %66 : vector<8x128xf32>
    %cst_44 = arith.constant 0.000000e+00 : f32
    %68 = vector.broadcast %cst_44 : f32 to vector<8x128xf32>
    %69 = arith.maximumf %67, %68 : vector<8x128xf32>
    %70 = arith.truncf %69 : vector<8x128xf32> to vector<8x128xbf16>
    %c5 = arith.constant 5 : index
    %c0_45 = arith.constant 0 : index
    %c0_46 = arith.constant 0 : index
    %71 = vector.load %arg2[%c5, %c0_45, %c0_46] : memref<7x128x128xbf16, #tpu.memory_space<vmem>>, vector<1x128x128xbf16>
    %72 = vector.shape_cast %71 : vector<1x128x128xbf16> to vector<128x128xbf16>
    %cst_47 = arith.constant dense<0.000000e+00> : vector<8x128xf32>
    %73 = tpu.matmul %70, %72, %cst_47 {dimension_numbers = #tpu.dot_dimension_numbers<[1], [0], [0], [1], [0, 0, 1, 1], [], []>} : vector<8x128xbf16>, vector<128x128xbf16>, vector<8x128xf32> -> vector<8x128xf32>
    %c5_48 = arith.constant 5 : index
    %c0_49 = arith.constant 0 : index
    %c0_50 = arith.constant 0 : index
    %74 = vector.load %arg3[%c5_48, %c0_49, %c0_50] : memref<12x8x128xf32, #tpu.memory_space<vmem>>, vector<1x8x128xf32>
    %75 = vector.shape_cast %74 : vector<1x8x128xf32> to vector<8x128xf32>
    %76 = arith.addf %73, %75 : vector<8x128xf32>
    %77 = arith.addf %60, %76 : vector<8x128xf32>
    %cst_51 = arith.constant 0.000000e+00 : f32
    %78 = vector.broadcast %cst_51 : f32 to vector<8x128xf32>
    %79 = arith.maximumf %77, %78 : vector<8x128xf32>
    %80 = arith.truncf %79 : vector<8x128xf32> to vector<8x128xbf16>
    %c6 = arith.constant 6 : index
    %c0_52 = arith.constant 0 : index
    %c0_53 = arith.constant 0 : index
    %81 = vector.load %arg2[%c6, %c0_52, %c0_53] : memref<7x128x128xbf16, #tpu.memory_space<vmem>>, vector<1x128x128xbf16>
    %82 = vector.shape_cast %81 : vector<1x128x128xbf16> to vector<128x128xbf16>
    %cst_54 = arith.constant dense<0.000000e+00> : vector<8x128xf32>
    %83 = tpu.matmul %80, %82, %cst_54 {dimension_numbers = #tpu.dot_dimension_numbers<[1], [0], [0], [1], [0, 0, 1, 1], [], []>} : vector<8x128xbf16>, vector<128x128xbf16>, vector<8x128xf32> -> vector<8x128xf32>
    %c6_55 = arith.constant 6 : index
    %c0_56 = arith.constant 0 : index
    %c0_57 = arith.constant 0 : index
    %84 = vector.load %arg3[%c6_55, %c0_56, %c0_57] : memref<12x8x128xf32, #tpu.memory_space<vmem>>, vector<1x8x128xf32>
    %85 = vector.shape_cast %84 : vector<1x8x128xf32> to vector<8x128xf32>
    %86 = arith.addf %83, %85 : vector<8x128xf32>
    %87 = tpu.iota {dimensions = array<i32: 1>} : vector<8x128xi32>
    %c64_i32 = arith.constant 64 : i32
    %88 = vector.broadcast %c64_i32 : i32 to vector<8x128xi32>
    %89 = arith.cmpi slt, %87, %88 : vector<8x128xi32>
    %c64_i32_58 = arith.constant 64 : i32
    %90 = vector.broadcast %c64_i32_58 : i32 to vector<8x128xi32>
    %91 = arith.cmpi sge, %87, %90 : vector<8x128xi32>
    %c80_i32 = arith.constant 80 : i32
    %92 = vector.broadcast %c80_i32 : i32 to vector<8x128xi32>
    %93 = arith.cmpi slt, %87, %92 : vector<8x128xi32>
    %94 = arith.andi %91, %93 : vector<8x128xi1>
    %cst_59 = arith.constant 0xFF800000 : f32
    %95 = vector.broadcast %cst_59 : f32 to vector<8x128xf32>
    %96 = arith.select %94, %86, %95 : vector<8x128xi1>, vector<8x128xf32>
    %cst_60 = arith.constant dense<0xFF800000> : vector<8xf32>
    %97 = vector.multi_reduction <maximumf>, %96, %cst_60 [1] : vector<8x128xf32> to vector<8xf32>
    %98 = vector.shape_cast %97 : vector<8xf32> to vector<8x1xf32>
    %99 = vector.broadcast %98 : vector<8x1xf32> to vector<8x128xf32>
    %100 = arith.subf %96, %99 : vector<8x128xf32>
    %101 = math.exp %100 : vector<8x128xf32>
    %cst_61 = arith.constant dense<0.000000e+00> : vector<8xf32>
    %102 = vector.multi_reduction <add>, %101, %cst_61 [1] : vector<8x128xf32> to vector<8xf32>
    %103 = vector.shape_cast %102 : vector<8xf32> to vector<8x1xf32>
    %104 = tpu.reciprocal %103 {approx = true} : vector<8x1xf32> -> vector<8x1xf32>
    %105 = vector.broadcast %104 : vector<8x1xf32> to vector<8x128xf32>
    %106 = arith.mulf %101, %105 : vector<8x128xf32>
    %c11 = arith.constant 11 : index
    %c0_62 = arith.constant 0 : index
    %c0_63 = arith.constant 0 : index
    %107 = vector.load %arg3[%c11, %c0_62, %c0_63] : memref<12x8x128xf32, #tpu.memory_space<vmem>>, vector<1x8x128xf32>
    %108 = vector.shape_cast %107 : vector<1x8x128xf32> to vector<8x128xf32>
    %109 = arith.mulf %106, %108 : vector<8x128xf32>
    %cst_64 = arith.constant dense<0.000000e+00> : vector<8xf32>
    %110 = vector.multi_reduction <add>, %109, %cst_64 [1] : vector<8x128xf32> to vector<8xf32>
    %111 = vector.shape_cast %110 : vector<8xf32> to vector<8x1xf32>
    %cst_65 = arith.constant 0xFF800000 : f32
    %112 = vector.broadcast %cst_65 : f32 to vector<8x128xf32>
    %113 = arith.select %89, %86, %112 : vector<8x128xi1>, vector<8x128xf32>
    %cst_66 = arith.constant dense<0xFF800000> : vector<8xf32>
    %114 = vector.multi_reduction <maximumf>, %113, %cst_66 [1] : vector<8x128xf32> to vector<8xf32>
    %115 = vector.shape_cast %114 : vector<8xf32> to vector<8x1xf32>
    %cst_67 = arith.constant 0x7F800000 : f32
    %116 = vector.broadcast %cst_67 : f32 to vector<8x128xf32>
    %117 = arith.select %89, %86, %116 : vector<8x128xi1>, vector<8x128xf32>
    %cst_68 = arith.constant dense<0x7F800000> : vector<8xf32>
    %118 = vector.multi_reduction <minimumf>, %117, %cst_68 [1] : vector<8x128xf32> to vector<8xf32>
    %119 = vector.shape_cast %118 : vector<8xf32> to vector<8x1xf32>
    %120 = vector.broadcast %119 : vector<8x1xf32> to vector<8x128xf32>
    %121 = arith.subf %86, %120 : vector<8x128xf32>
    %122 = arith.subf %115, %119 : vector<8x1xf32>
    %123 = tpu.reciprocal %122 {approx = true} : vector<8x1xf32> -> vector<8x1xf32>
    %124 = vector.broadcast %123 : vector<8x1xf32> to vector<8x128xf32>
    %125 = arith.mulf %121, %124 : vector<8x128xf32>
    %126 = arith.select %89, %125, %106 : vector<8x128xi1>, vector<8x128xf32>
    %c80_i32_69 = arith.constant 80 : i32
    %127 = vector.broadcast %c80_i32_69 : i32 to vector<8x128xi32>
    %128 = arith.cmpi eq, %87, %127 : vector<8x128xi32>
    %129 = vector.shape_cast %111 : vector<8x1xf32> to vector<8x1xf32>
    %130 = vector.broadcast %129 : vector<8x1xf32> to vector<8x128xf32>
    %131 = arith.select %128, %130, %126 : vector<8x128xi1>, vector<8x128xf32>
    %c0_70 = arith.constant 0 : index
    %c0_71 = arith.constant 0 : index
    %132 = vector.load %arg4[%c0_70, %c0_71] : memref<8x128xf32, #tpu.memory_space<vmem>>, vector<8x128xf32>
    tpu.vector_store %arg4[%c0_70, %c0_71], %131 {strides = array<i32>} : memref<8x128xf32, #tpu.memory_space<vmem>>, vector<8x128xf32>,
    return
  }
}

</mosaic_0001>

<llo_original>
// kernel: dynamics_forward.1
$region0: #{dynamics_forward.1}
  #allocation0 [shape = 'u32[]', space=smem, size = 0x4, offset = 0x4, fixed_abs, tag = 'smem constant byte address 0x4 - core index']
  #allocation1 [shape = 'u32[72,128]{1,0:T(1,128)}', space=vmem, size = 0x9000, scoped, tag = 'internal scratch']
  %s0 = inlined_call_operand.vmem [shape: f32[8,128], index: 0, kind: input, shape index: {}]
  %s1 = inlined_call_operand.vmem [shape: s32[8,1], index: 1, kind: input, shape index: {}]
  %s2 = inlined_call_operand.hbm [shape: bf16[7,128,128], index: 2, kind: input, shape index: {}]
  %s3 = inlined_call_operand.hbm [shape: f32[12,8,128], index: 3, kind: input, shape index: {}]
  %s4 = inlined_call_operand.vmem [shape: f32[8,128], index: 4, kind: output, shape index: {}]
  %s5 = sld [smem:[#allocation0]]
  $region34: #{dynamics_forward.1} parent=0
    _
  %s7 = ssub.s32 1, %s5
  %s8 = scalar_select 0, %s7, %s5
  $region1: #{dynamics_forward.1} parent=0
    #allocation2 [shape = 'u8[229376]{0}', space=vmem, size = 0x38000, scoped, tag = 'input window, operand 2, single buffered']
    #allocation3 [shape = 's32[1]{0}', space=sflag, size = 0x4, scoped, tag = 'scoped memory for dynamics_forward.1']
    #allocation4 [shape = 'u8[49152]{0}', space=vmem, size = 0xc000, scoped, tag = 'input window, operand 3, single buffered']
    #allocation5 [shape = 's32[1]{0}', space=sflag, size = 0x4, scoped, tag = 'scoped memory for dynamics_forward.1']
    %9 = vsyncpa [#allocation3], 0
    %10 = vsyncpa [#allocation5], 0
    // Predicated region
    $region2: #{dynamics_forward.1} parent=1 // pred_check
      _
    $region3: #{dynamics_forward.1} parent=1 // pred_check_branch
      %12 = sbr.rel (0) target = $region5
    $region4: #{dynamics_forward.1} parent=1 // pred_region
      _
    $region5: #{dynamics_forward.1} parent=1 // pred_fallthru
      _
    // Predicated region
    $region6: #{dynamics_forward.1} parent=1 // pred_check
      _
    $region7: #{dynamics_forward.1} parent=1 // pred_check_branch
      %14 = sbr.rel (0) target = $region9
    $region8: #{dynamics_forward.1} parent=1 // pred_region
      _
    $region9: #{dynamics_forward.1} parent=1 // pred_fallthru
      _
    // Predicated region
    $region10: #{dynamics_forward.1} parent=1 // pred_check
      _
    $region11: #{dynamics_forward.1} parent=1 // pred_check_branch
      %16 = sbr.rel (0) target = $region13
    $region12: #{dynamics_forward.1} parent=1 // pred_region
      %18 = vsyncadd [#allocation3], 0
      %s19 = sshll.u32 %s2, 4
      %s20 = int_to_ptr.hbm [resolvable:$true] %s19
      %s21 = sshll.u32 [#allocation2], 4
      %s22 = int_to_ptr.vmem [resolvable:$true] %s21
      %27 = dma.hbm_to_vmem [thread:$0]  %s20, 7168, %s22, [#allocation3], 64, 64, 4
    $region13: #{dynamics_forward.1} parent=1 // pred_fallthru
      _
    // Predicated region
    $region14: #{dynamics_forward.1} parent=1 // pred_check
      _
    $region15: #{dynamics_forward.1} parent=1 // pred_check_branch
      %29 = sbr.rel (0) target = $region17
    $region16: #{dynamics_forward.1} parent=1 // pred_region
      %31 = vsyncadd [#allocation5], 0
      %s32 = sshll.u32 %s3, 4
      %s33 = int_to_ptr.hbm [resolvable:$true] %s32
      %s34 = sshll.u32 [#allocation4], 4
      %s35 = int_to_ptr.vmem [resolvable:$true] %s34
      %40 = dma.hbm_to_vmem [thread:$0]  %s33, 1536, %s35, [#allocation5], 128, 128, 8
    $region17: #{dynamics_forward.1} parent=1 // pred_fallthru
      _
    // Predicated region
    $region18: #{dynamics_forward.1} parent=1 // pred_check
      _
    $region19: #{dynamics_forward.1} parent=1 // pred_check_branch
      %42 = sbr.rel (0) target = $region21
    $region20: #{dynamics_forward.1} parent=1 // pred_region
      %44 = dma.done [#allocation3], 7168
    $region21: #{dynamics_forward.1} parent=1 // pred_fallthru
      _
    // Predicated region
    $region22: #{dynamics_forward.1} parent=1 // pred_check
      _
    $region23: #{dynamics_forward.1} parent=1 // pred_check_branch
      %46 = sbr.rel (0) target = $region25
    $region24: #{dynamics_forward.1} parent=1 // pred_region
      %48 = dma.done [#allocation5], 1536
    $region25: #{dynamics_forward.1} parent=1 // pred_fallthru
      _
    %v49 = vld [vmem:[%s0] sm:$0xff]
    %v50 = vld [vmem:[%s1] sm:$0xff]
    %s51 = scalar_lea.vmem [#allocation4], 56
    %v52 = vld [vmem:[%s51] sm:$0xff]
    %vm53 = vcmp.eq.s32.totalorder %v50, 1
    %s54 = scalar_lea.vmem [#allocation4], 64
    %v55 = vld [vmem:[%s54] sm:$0xff]
    %v56 = vsel %vm53, 1, 0
    %57 = vset.pattern.permute.xlu0 0
    %58 = vperm.xlu0 %57, %v56
    %v59 = vpop.permute.xlu0 %58
    %vm60 = vcmp.eq.s32.totalorder %v59, 1
    %v61 = vsel %vm60, %v55, %v52
    %vm62 = vcmp.eq.s32.totalorder %v50, 2
    %s63 = scalar_lea.vmem [#allocation4], 72
    %v64 = vld [vmem:[%s63] sm:$0xff]
    %v65 = vsel %vm62, 1, 0
    %66 = vset.pattern.permute.xlu0 0
    %67 = vperm.xlu0 %66, %v65
    %v68 = vpop.permute.xlu0 %67
    %vm69 = vcmp.eq.s32.totalorder %v68, 1
    %v70 = vsel %vm69, %v64, %v61
    %vm71 = vcmp.eq.s32.totalorder %v50, 3
    %s72 = scalar_lea.vmem [#allocation4], 80
    %v73 = vld [vmem:[%s72] sm:$0xff]
    %v74 = vsel %vm71, 1, 0
    %75 = vset.pattern.permute.xlu0 0
    %76 = vperm.xlu0 %75, %v74
    %v77 = vpop.permute.xlu0 %76
    %vm78 = vcmp.eq.s32.totalorder %v77, 1
    %v79 = vsel %vm78, %v73, %v70
    %v80 = vpack.c.bf16 %v49, %v49
    %v81 = vld [vmem:[#allocation2] sm:$0xf]
    %v82 = vld [vmem:[#allocation2 + $0x4] sm:$0xf]
    %v83 = vld [vmem:[#allocation2 + $0x8] sm:$0xf]
    %v84 = vld [vmem:[#allocation2 + $0xc] sm:$0xf]
    %v85 = vld [vmem:[#allocation2 + $0x10] sm:$0xf]
    %v86 = vld [vmem:[#allocation2 + $0x14] sm:$0xf]
    %v87 = vld [vmem:[#allocation2 + $0x18] sm:$0xf]
    %v88 = vld [vmem:[#allocation2 + $0x1c] sm:$0xf]
    %v89 = vld [vmem:[#allocation2 + $0x20] sm:$0xf]
    %v90 = vld [vmem:[#allocation2 + $0x24] sm:$0xf]
    %v91 = vld [vmem:[#allocation2 + $0x28] sm:$0xf]
    %v92 = vld [vmem:[#allocation2 + $0x2c] sm:$0xf]
    %v93 = vld [vmem:[#allocation2 + $0x30] sm:$0xf]
    %v94 = vld [vmem:[#allocation2 + $0x34] sm:$0xf]
    %v95 = vld [vmem:[#allocation2 + $0x38] sm:$0xf]
    %v96 = vld [vmem:[#allocation2 + $0x3c] sm:$0xf]
    %v97 = vld [vmem:[#allocation4] sm:$0xff]
    %v114 = vunpack.c.l.b16 %v81
    %v115 = vunpack.c.l.b16 %v82
    %v116 = vunpack.c.l.b16 %v83
    %v117 = vunpack.c.l.b16 %v84
    %v118 = vunpack.c.l.b16 %v85
    %v119 = vunpack.c.l.b16 %v86
    %v120 = vunpack.c.l.b16 %v87
    %v121 = vunpack.c.l.b16 %v88
    %v122 = vunpack.c.l.b16 %v89
    %v123 = vunpack.c.l.b16 %v90
    %v124 = vunpack.c.l.b16 %v91
    %v125 = vunpack.c.l.b16 %v92
    %v126 = vunpack.c.l.b16 %v93
    %v127 = vunpack.c.l.b16 %v94
    %v128 = vunpack.c.l.b16 %v95
    %v129 = vunpack.c.l.b16 %v96
    %v130 = vpack.c.b16 %v115, %v114
    %v131 = vpack.c.b16 %v117, %v116
    %v132 = vpack.c.b16 %v119, %v118
    %v133 = vpack.c.b16 %v121, %v120
    %v134 = vpack.c.b16 %v123, %v122
    %v135 = vpack.c.b16 %v125, %v124
    %v136 = vpack.c.b16 %v127, %v126
    %v137 = vpack.c.b16 %v129, %v128
    %146 = vmatpush.bf16.msra.mxu0 %v137
    %147 = vmatpush.bf16.msra.mxu0 %v136
    %148 = vmatpush.bf16.msra.mxu0 %v135
    %149 = vmatpush.bf16.msra.mxu0 %v134
    %150 = vmatpush.bf16.msra.mxu0 %v133
    %151 = vmatpush.bf16.msra.mxu0 %v132
    %152 = vmatpush.bf16.msra.mxu0 %v131
    %153 = vmatpush.bf16.msra.mxu0 %v130
    %154 = vmatmul.bf16.gmra.mxu0 %v80
    %v155 = vpop.f32.mrf.mxu0
    %v156 = vadd.f32 %v97, %v155
    %v157 = vpop.f32.mrf.mxu0
    %158 = vdwg.mxu0
    %v159 = vadd.f32 %v156, %v79
    %v160 = vmax.f32 %v159, 0.0
    %v161 = vpack.c.bf16 %v160, %v160
    %s162 = scalar_lea.vmem [#allocation2], 64
    %v163 = vld [vmem:[%s162] sm:$0xf]
    %v164 = vld [vmem:[%s162 + $0x4] sm:$0xf]
    %v165 = vld [vmem:[%s162 + $0x8] sm:$0xf]
    %v166 = vld [vmem:[%s162 + $0xc] sm:$0xf]
    %v167 = vld [vmem:[%s162 + $0x10] sm:$0xf]
    %v168 = vld [vmem:[%s162 + $0x14] sm:$0xf]
    %v169 = vld [vmem:[%s162 + $0x18] sm:$0xf]
    %v170 = vld [vmem:[%s162 + $0x1c] sm:$0xf]
    %v171 = vld [vmem:[%s162 + $0x20] sm:$0xf]
    %v172 = vld [vmem:[%s162 + $0x24] sm:$0xf]
    %v173 = vld [vmem:[%s162 + $0x28] sm:$0xf]
    %v174 = vld [vmem:[%s162 + $0x2c] sm:$0xf]
    %v175 = vld [vmem:[%s162 + $0x30] sm:$0xf]
    %v176 = vld [vmem:[%s162 + $0x34] sm:$0xf]
    %v177 = vld [vmem:[%s162 + $0x38] sm:$0xf]
    %v178 = vld [vmem:[%s162 + $0x3c] sm:$0xf]
    %s179 = scalar_lea.vmem [#allocation4], 8
    %v180 = vld [vmem:[%s179] sm:$0xff]
    %v197 = vunpack.c.l.b16 %v163
    %v198 = vunpack.c.l.b16 %v164
    %v199 = vunpack.c.l.b16 %v165
    %v200 = vunpack.c.l.b16 %v166
    %v201 = vunpack.c.l.b16 %v167
    %v202 = vunpack.c.l.b16 %v168
    %v203 = vunpack.c.l.b16 %v169
    %v204 = vunpack.c.l.b16 %v170
    %v205 = vunpack.c.l.b16 %v171
    %v206 = vunpack.c.l.b16 %v172
    %v207 = vunpack.c.l.b16 %v173
    %v208 = vunpack.c.l.b16 %v174
    %v209 = vunpack.c.l.b16 %v175
    %v210 = vunpack.c.l.b16 %v176
    %v211 = vunpack.c.l.b16 %v177
    %v212 = vunpack.c.l.b16 %v178
    %v213 = vpack.c.b16 %v198, %v197
    %v214 = vpack.c.b16 %v200, %v199
    %v215 = vpack.c.b16 %v202, %v201
    %v216 = vpack.c.b16 %v204, %v203
    %v217 = vpack.c.b16 %v206, %v205
    %v218 = vpack.c.b16 %v208, %v207
    %v219 = vpack.c.b16 %v210, %v209
    %v220 = vpack.c.b16 %v212, %v211
    %229 = vmatpush.bf16.msra.mxu0 %v220
    %230 = vmatpush.bf16.msra.mxu0 %v219
    %231 = vmatpush.bf16.msra.mxu0 %v218
    %232 = vmatpush.bf16.msra.mxu0 %v217
    %233 = vmatpush.bf16.msra.mxu0 %v216
    %234 = vmatpush.bf16.msra.mxu0 %v215
    %235 = vmatpush.bf16.msra.mxu0 %v214
    %236 = vmatpush.bf16.msra.mxu0 %v213
    %237 = vmatmul.bf16.gmra.mxu0 %v161
    %v238 = vpop.f32.mrf.mxu0
    %v239 = vadd.f32 %v180, %v238
    %v240 = vpop.f32.mrf.mxu0
    %241 = vdwg.mxu0
    %v242 = vpack.c.bf16 %v239, %v239
    %s243 = scalar_lea.vmem [#allocation2], 128
    %v244 = vld [vmem:[%s243] sm:$0xf]
    %v245 = vld [vmem:[%s243 + $0x4] sm:$0xf]
    %v246 = vld [vmem:[%s243 + $0x8] sm:$0xf]
    %v247 = vld [vmem:[%s243 + $0xc] sm:$0xf]
    %v248 = vld [vmem:[%s243 + $0x10] sm:$0xf]
    %v249 = vld [vmem:[%s243 + $0x14] sm:$0xf]
    %v250 = vld [vmem:[%s243 + $0x18] sm:$0xf]
    %v251 = vld [vmem:[%s243 + $0x1c] sm:$0xf]
    %v252 = vld [vmem:[%s243 + $0x20] sm:$0xf]
    %v253 = vld [vmem:[%s243 + $0x24] sm:$0xf]
    %v254 = vld [vmem:[%s243 + $0x28] sm:$0xf]
    %v255 = vld [vmem:[%s243 + $0x2c] sm:$0xf]
    %v256 = vld [vmem:[%s243 + $0x30] sm:$0xf]
    %v257 = vld [vmem:[%s243 + $0x34] sm:$0xf]
    %v258 = vld [vmem:[%s243 + $0x38] sm:$0xf]
    %v259 = vld [vmem:[%s243 + $0x3c] sm:$0xf]
    %s260 = scalar_lea.vmem [#allocation4], 16
    %v261 = vld [vmem:[%s260] sm:$0xff]
    %v278 = vunpack.c.l.b16 %v244
    %v279 = vunpack.c.l.b16 %v245
    %v280 = vunpack.c.l.b16 %v246
    %v281 = vunpack.c.l.b16 %v247
    %v282 = vunpack.c.l.b16 %v248
    %v283 = vunpack.c.l.b16 %v249
    %v284 = vunpack.c.l.b16 %v250
    %v285 = vunpack.c.l.b16 %v251
    %v286 = vunpack.c.l.b16 %v252
    %v287 = vunpack.c.l.b16 %v253
    %v288 = vunpack.c.l.b16 %v254
    %v289 = vunpack.c.l.b16 %v255
    %v290 = vunpack.c.l.b16 %v256
    %v291 = vunpack.c.l.b16 %v257
    %v292 = vunpack.c.l.b16 %v258
    %v293 = vunpack.c.l.b16 %v259
    %v294 = vpack.c.b16 %v279, %v278
    %v295 = vpack.c.b16 %v281, %v280
    %v296 = vpack.c.b16 %v283, %v282
    %v297 = vpack.c.b16 %v285, %v284
    %v298 = vpack.c.b16 %v287, %v286
    %v299 = vpack.c.b16 %v289, %v288
    %v300 = vpack.c.b16 %v291, %v290
    %v301 = vpack.c.b16 %v293, %v292
    %310 = vmatpush.bf16.msra.mxu0 %v301
    %311 = vmatpush.bf16.msra.mxu0 %v300
    %312 = vmatpush.bf16.msra.mxu0 %v299
    %313 = vmatpush.bf16.msra.mxu0 %v298
    %314 = vmatpush.bf16.msra.mxu0 %v297
    %315 = vmatpush.bf16.msra.mxu0 %v296
    %316 = vmatpush.bf16.msra.mxu0 %v295
    %317 = vmatpush.bf16.msra.mxu0 %v294
    %318 = vmatmul.bf16.gmra.mxu0 %v242
    %v319 = vpop.f32.mrf.mxu0
    %v320 = vadd.f32 %v261, %v319
    %v321 = vpop.f32.mrf.mxu0
    %322 = vdwg.mxu0
    %v323 = vmax.f32 %v320, 0.0
    %v324 = vpack.c.bf16 %v323, %v323
    %s325 = scalar_lea.vmem [#allocation2], 192
    %v326 = vld [vmem:[%s325] sm:$0xf]
    %v327 = vld [vmem:[%s325 + $0x4] sm:$0xf]
    %v328 = vld [vmem:[%s325 + $0x8] sm:$0xf]
    %v329 = vld [vmem:[%s325 + $0xc] sm:$0xf]
    %v330 = vld [vmem:[%s325 + $0x10] sm:$0xf]
    %v331 = vld [vmem:[%s325 + $0x14] sm:$0xf]
    %v332 = vld [vmem:[%s325 + $0x18] sm:$0xf]
    %v333 = vld [vmem:[%s325 + $0x1c] sm:$0xf]
    %v334 = vld [vmem:[%s325 + $0x20] sm:$0xf]
    %v335 = vld [vmem:[%s325 + $0x24] sm:$0xf]
    %v336 = vld [vmem:[%s325 + $0x28] sm:$0xf]
    %v337 = vld [vmem:[%s325 + $0x2c] sm:$0xf]
    %v338 = vld [vmem:[%s325 + $0x30] sm:$0xf]
    %v339 = vld [vmem:[%s325 + $0x34] sm:$0xf]
    %v340 = vld [vmem:[%s325 + $0x38] sm:$0xf]
    %v341 = vld [vmem:[%s325 + $0x3c] sm:$0xf]
    %s342 = scalar_lea.vmem [#allocation4], 24
    %v343 = vld [vmem:[%s342] sm:$0xff]
    %v360 = vunpack.c.l.b16 %v326
    %v361 = vunpack.c.l.b16 %v327
    %v362 = vunpack.c.l.b16 %v328
    %v363 = vunpack.c.l.b16 %v329
    %v364 = vunpack.c.l.b16 %v330
    %v365 = vunpack.c.l.b16 %v331
    %v366 = vunpack.c.l.b16 %v332
    %v367 = vunpack.c.l.b16 %v333
    %v368 = vunpack.c.l.b16 %v334
    %v369 = vunpack.c.l.b16 %v335
    %v370 = vunpack.c.l.b16 %v336
    %v371 = vunpack.c.l.b16 %v337
    %v372 = vunpack.c.l.b16 %v338
    %v373 = vunpack.c.l.b16 %v339
    %v374 = vunpack.c.l.b16 %v340
    %v375 = vunpack.c.l.b16 %v341
    %v376 = vpack.c.b16 %v361, %v360
    %v377 = vpack.c.b16 %v363, %v362
    %v378 = vpack.c.b16 %v365, %v364
    %v379 = vpack.c.b16 %v367, %v366
    %v380 = vpack.c.b16 %v369, %v368
    %v381 = vpack.c.b16 %v371, %v370
    %v382 = vpack.c.b16 %v373, %v372
    %v383 = vpack.c.b16 %v375, %v374
    %392 = vmatpush.bf16.msra.mxu0 %v383
    %393 = vmatpush.bf16.msra.mxu0 %v382
    %394 = vmatpush.bf16.msra.mxu0 %v381
    %395 = vmatpush.bf16.msra.mxu0 %v380
    %396 = vmatpush.bf16.msra.mxu0 %v379
    %397 = vmatpush.bf16.msra.mxu0 %v378
    %398 = vmatpush.bf16.msra.mxu0 %v377
    %399 = vmatpush.bf16.msra.mxu0 %v376
    %400 = vmatmul.bf16.gmra.mxu0 %v324
    %v401 = vpop.f32.mrf.mxu0
    %v402 = vadd.f32 %v343, %v401
    %v403 = vpop.f32.mrf.mxu0
    %404 = vdwg.mxu0
    %v405 = vadd.f32 %v239, %v402
    %v406 = vmax.f32 %v405, 0.0
    %v407 = vpack.c.bf16 %v406, %v406
    %s408 = scalar_lea.vmem [#allocation2], 256
    %v409 = vld [vmem:[%s408] sm:$0xf]
    %v410 = vld [vmem:[%s408 + $0x4] sm:$0xf]
    %v411 = vld [vmem:[%s408 + $0x8] sm:$0xf]
    %v412 = vld [vmem:[%s408 + $0xc] sm:$0xf]
    %v413 = vld [vmem:[%s408 + $0x10] sm:$0xf]
    %v414 = vld [vmem:[%s408 + $0x14] sm:$0xf]
    %v415 = vld [vmem:[%s408 + $0x18] sm:$0xf]
    %v416 = vld [vmem:[%s408 + $0x1c] sm:$0xf]
    %v417 = vld [vmem:[%s408 + $0x20] sm:$0xf]
    %v418 = vld [vmem:[%s408 + $0x24] sm:$0xf]
    %v419 = vld [vmem:[%s408 + $0x28] sm:$0xf]
    %v420 = vld [vmem:[%s408 + $0x2c] sm:$0xf]
    %v421 = vld [vmem:[%s408 + $0x30] sm:$0xf]
    %v422 = vld [vmem:[%s408 + $0x34] sm:$0xf]
    %v423 = vld [vmem:[%s408 + $0x38] sm:$0xf]
    %v424 = vld [vmem:[%s408 + $0x3c] sm:$0xf]
    %s425 = scalar_lea.vmem [#allocation4], 32
    %v426 = vld [vmem:[%s425] sm:$0xff]
    %v443 = vunpack.c.l.b16 %v409
    %v444 = vunpack.c.l.b16 %v410
    %v445 = vunpack.c.l.b16 %v411
    %v446 = vunpack.c.l.b16 %v412
    %v447 = vunpack.c.l.b16 %v413
    %v448 = vunpack.c.l.b16 %v414
    %v449 = vunpack.c.l.b16 %v415
    %v450 = vunpack.c.l.b16 %v416
    %v451 = vunpack.c.l.b16 %v417
    %v452 = vunpack.c.l.b16 %v418
    %v453 = vunpack.c.l.b16 %v419
    %v454 = vunpack.c.l.b16 %v420
    %v455 = vunpack.c.l.b16 %v421
    %v456 = vunpack.c.l.b16 %v422
    %v457 = vunpack.c.l.b16 %v423
    %v458 = vunpack.c.l.b16 %v424
    %v459 = vpack.c.b16 %v444, %v443
    %v460 = vpack.c.b16 %v446, %v445
    %v461 = vpack.c.b16 %v448, %v447
    %v462 = vpack.c.b16 %v450, %v449
    %v463 = vpack.c.b16 %v452, %v451
    %v464 = vpack.c.b16 %v454, %v453
    %v465 = vpack.c.b16 %v456, %v455
    %v466 = vpack.c.b16 %v458, %v457
    %475 = vmatpush.bf16.msra.mxu0 %v466
    %476 = vmatpush.bf16.msra.mxu0 %v465
    %477 = vmatpush.bf16.msra.mxu0 %v464
    %478 = vmatpush.bf16.msra.mxu0 %v463
    %479 = vmatpush.bf16.msra.mxu0 %v462
    %480 = vmatpush.bf16.msra.mxu0 %v461
    %481 = vmatpush.bf16.msra.mxu0 %v460
    %482 = vmatpush.bf16.msra.mxu0 %v459
    %483 = vmatmul.bf16.gmra.mxu0 %v407
    %v484 = vpop.f32.mrf.mxu0
    %v485 = vadd.f32 %v426, %v484
    %v486 = vpop.f32.mrf.mxu0
    %487 = vdwg.mxu0
    %v488 = vmax.f32 %v485, 0.0
    %v489 = vpack.c.bf16 %v488, %v488
    %s490 = scalar_lea.vmem [#allocation2], 320
    %v491 = vld [vmem:[%s490] sm:$0xf]
    %v492 = vld [vmem:[%s490 + $0x4] sm:$0xf]
    %v493 = vld [vmem:[%s490 + $0x8] sm:$0xf]
    %v494 = vld [vmem:[%s490 + $0xc] sm:$0xf]
    %v495 = vld [vmem:[%s490 + $0x10] sm:$0xf]
    %v496 = vld [vmem:[%s490 + $0x14] sm:$0xf]
    %v497 = vld [vmem:[%s490 + $0x18] sm:$0xf]
    %v498 = vld [vmem:[%s490 + $0x1c] sm:$0xf]
    %v499 = vld [vmem:[%s490 + $0x20] sm:$0xf]
    %v500 = vld [vmem:[%s490 + $0x24] sm:$0xf]
    %v501 = vld [vmem:[%s490 + $0x28] sm:$0xf]
    %v502 = vld [vmem:[%s490 + $0x2c] sm:$0xf]
    %v503 = vld [vmem:[%s490 + $0x30] sm:$0xf]
    %v504 = vld [vmem:[%s490 + $0x34] sm:$0xf]
    %v505 = vld [vmem:[%s490 + $0x38] sm:$0xf]
    %v506 = vld [vmem:[%s490 + $0x3c] sm:$0xf]
    %s507 = scalar_lea.vmem [#allocation4], 40
    %v508 = vld [vmem:[%s507] sm:$0xff]
    %v525 = vunpack.c.l.b16 %v491
    %v526 = vunpack.c.l.b16 %v492
    %v527 = vunpack.c.l.b16 %v493
    %v528 = vunpack.c.l.b16 %v494
    %v529 = vunpack.c.l.b16 %v495
    %v530 = vunpack.c.l.b16 %v496
    %v531 = vunpack.c.l.b16 %v497
    %v532 = vunpack.c.l.b16 %v498
    %v533 = vunpack.c.l.b16 %v499
    %v534 = vunpack.c.l.b16 %v500
    %v535 = vunpack.c.l.b16 %v501
    %v536 = vunpack.c.l.b16 %v502
    %v537 = vunpack.c.l.b16 %v503
    %v538 = vunpack.c.l.b16 %v504
    %v539 = vunpack.c.l.b16 %v505
    %v540 = vunpack.c.l.b16 %v506
    %v541 = vpack.c.b16 %v526, %v525
    %v542 = vpack.c.b16 %v528, %v527
    %v543 = vpack.c.b16 %v530, %v529
    %v544 = vpack.c.b16 %v532, %v531
    %v545 = vpack.c.b16 %v534, %v533
    %v546 = vpack.c.b16 %v536, %v535
    %v547 = vpack.c.b16 %v538, %v537
    %v548 = vpack.c.b16 %v540, %v539
    %557 = vmatpush.bf16.msra.mxu0 %v548
    %558 = vmatpush.bf16.msra.mxu0 %v547
    %559 = vmatpush.bf16.msra.mxu0 %v546
    %560 = vmatpush.bf16.msra.mxu0 %v545
    %561 = vmatpush.bf16.msra.mxu0 %v544
    %562 = vmatpush.bf16.msra.mxu0 %v543
    %563 = vmatpush.bf16.msra.mxu0 %v542
    %564 = vmatpush.bf16.msra.mxu0 %v541
    %565 = vmatmul.bf16.gmra.mxu0 %v489
    %v566 = vpop.f32.mrf.mxu0
    %v567 = vadd.f32 %v508, %v566
    %v568 = vpop.f32.mrf.mxu0
    %569 = vdwg.mxu0
    %v570 = vadd.f32 %v406, %v567
    %v571 = vmax.f32 %v570, 0.0
    %v572 = vpack.c.bf16 %v571, %v571
    %s573 = scalar_lea.vmem [#allocation2], 384
    %v574 = vld [vmem:[%s573] sm:$0xf]
    %v575 = vld [vmem:[%s573 + $0x4] sm:$0xf]
    %v576 = vld [vmem:[%s573 + $0x8] sm:$0xf]
    %v577 = vld [vmem:[%s573 + $0xc] sm:$0xf]
    %v578 = vld [vmem:[%s573 + $0x10] sm:$0xf]
    %v579 = vld [vmem:[%s573 + $0x14] sm:$0xf]
    %v580 = vld [vmem:[%s573 + $0x18] sm:$0xf]
    %v581 = vld [vmem:[%s573 + $0x1c] sm:$0xf]
    %v582 = vld [vmem:[%s573 + $0x20] sm:$0xf]
    %v583 = vld [vmem:[%s573 + $0x24] sm:$0xf]
    %v584 = vld [vmem:[%s573 + $0x28] sm:$0xf]
    %v585 = vld [vmem:[%s573 + $0x2c] sm:$0xf]
    %v586 = vld [vmem:[%s573 + $0x30] sm:$0xf]
    %v587 = vld [vmem:[%s573 + $0x34] sm:$0xf]
    %v588 = vld [vmem:[%s573 + $0x38] sm:$0xf]
    %v589 = vld [vmem:[%s573 + $0x3c] sm:$0xf]
    %s590 = scalar_lea.vmem [#allocation4], 48
    %v591 = vld [vmem:[%s590] sm:$0xff]
    %v608 = vunpack.c.l.b16 %v574
    %v609 = vunpack.c.l.b16 %v575
    %v610 = vunpack.c.l.b16 %v576
    %v611 = vunpack.c.l.b16 %v577
    %v612 = vunpack.c.l.b16 %v578
    %v613 = vunpack.c.l.b16 %v579
    %v614 = vunpack.c.l.b16 %v580
    %v615 = vunpack.c.l.b16 %v581
    %v616 = vunpack.c.l.b16 %v582
    %v617 = vunpack.c.l.b16 %v583
    %v618 = vunpack.c.l.b16 %v584
    %v619 = vunpack.c.l.b16 %v585
    %v620 = vunpack.c.l.b16 %v586
    %v621 = vunpack.c.l.b16 %v587
    %v622 = vunpack.c.l.b16 %v588
    %v623 = vunpack.c.l.b16 %v589
    %v624 = vpack.c.b16 %v609, %v608
    %v625 = vpack.c.b16 %v611, %v610
    %v626 = vpack.c.b16 %v613, %v612
    %v627 = vpack.c.b16 %v615, %v614
    %v628 = vpack.c.b16 %v617, %v616
    %v629 = vpack.c.b16 %v619, %v618
    %v630 = vpack.c.b16 %v621, %v620
    %v631 = vpack.c.b16 %v623, %v622
    %640 = vmatpush.bf16.msra.mxu0 %v631
    %641 = vmatpush.bf16.msra.mxu0 %v630
    %642 = vmatpush.bf16.msra.mxu0 %v629
    %643 = vmatpush.bf16.msra.mxu0 %v628
    %644 = vmatpush.bf16.msra.mxu0 %v627
    %645 = vmatpush.bf16.msra.mxu0 %v626
    %646 = vmatpush.bf16.msra.mxu0 %v625
    %647 = vmatpush.bf16.msra.mxu0 %v624
    %648 = vmatmul.bf16.gmra.mxu0 %v572
    %v649 = vpop.f32.mrf.mxu0
    %v650 = vadd.f32 %v591, %v649
    %v651 = vpop.f32.mrf.mxu0
    %652 = vdwg.mxu0
    %v653 = vlaneseq
    %v654 = vand.u32 %v653, 127
    %vm655 = vcmp.lt.s32.totalorder %v654, 64
    %vm656 = vcmp.ge.s32.totalorder %v654, 64
    %vm657 = vcmp.lt.s32.totalorder %v654, 80
    %vm658 = vmand %vm656, %vm657
    %v659 = vsel %vm658, %v650, -inf
    %660 = vmax.xlane.f32.xlu0 %v659
    %v661 = vpop.xlane.xlu0 %660
    %v662 = vsub.f32 %v659, %v661
    %v663 = vmul.f32 %v662, 1.442695
    %v664 = vpow.pop %v663
    %665 = vadd.xlane.f32.xlu0 %v664
    %v666 = vpop.xlane.xlu0 %665
    %v667 = vrcp.pop %v666
    %v668 = vmul.f32 %v664, %v667
    %s669 = scalar_lea.vmem [#allocation4], 88
    %v670 = vld [vmem:[%s669] sm:$0xff]
    %v671 = vmul.f32 %v668, %v670
    %672 = vadd.xlane.f32.xlu0 %v671
    %v673 = vpop.xlane.xlu0 %672
    %v674 = vsel %vm655, %v650, -inf
    %675 = vmax.xlane.f32.xlu0 %v674
    %v676 = vpop.xlane.xlu0 %675
    %v677 = vsel %vm655, %v650, inf
    %678 = vmin.xlane.f32.xlu0 %v677
    %v679 = vpop.xlane.xlu0 %678
    %v680 = vsub.f32 %v650, %v679
    %v681 = vsub.f32 %v676, %v679
    %v682 = vrcp.pop %v681
    %v683 = vmul.f32 %v680, %v682
    %v684 = vsel %vm655, %v683, %v668
    %vm685 = vcmp.eq.s32.totalorder %v654, 80
    %v686 = vsel %vm685, %v673, %v684
    %687 = vst [vmem:[%s4] sm:$0xff] %v686
    // Predicated region
    $region26: #{dynamics_forward.1} parent=1 // pred_check
      _
    $region27: #{dynamics_forward.1} parent=1 // pred_check_branch
      %689 = sbr.rel (0) target = $region29
    $region28: #{dynamics_forward.1} parent=1 // pred_region
      _
    $region29: #{dynamics_forward.1} parent=1 // pred_fallthru
      _
    // Predicated region
    $region30: #{dynamics_forward.1} parent=1 // pred_check
      _
    $region31: #{dynamics_forward.1} parent=1 // pred_check_branch
      %691 = sbr.rel (0) target = $region33
    $region32: #{dynamics_forward.1} parent=1 // pred_region
      _
    $region33: #{dynamics_forward.1} parent=1 // pred_fallthru
      _
    %692 = vsyncpa [#allocation3], 1
    %693 = vsyncpa [#allocation5], 1

</llo_original>
